<compile_context>
chip_gen: v6e
topology: v6e:2x2x1
jax: 0.10.0
libtpu: 0.0.40
codegen_flags: <defaults>
</compile_context>

<pallas_src>
import jax
import jax.numpy as jnp
from jax.experimental import pallas as pl
from jax.experimental.pallas import tpu as pltpu

_TM_MAX = 8192  # batch tile (lane axis); multiple of 128, ~3 MiB VMEM worst case


def _mlp_kernel(x_ref, w1_ref, b1_ref, w2_ref, b2_ref, w3_ref, b3_ref, o_ref):
    # Batch lives on the lane (last) axis; features on sublanes.
    # Layer 1: ReLU(W1 @ xT + b1) -> (30, tile)
    h1 = jnp.dot(w1_ref[...], x_ref[...], preferred_element_type=jnp.float32)
    h1 = jnp.maximum(h1 + b1_ref[...], 0.0)
    # Layer 2: ReLU(W2 @ h1 + b2) -> (20, tile)
    h2 = jnp.dot(w2_ref[...], h1, preferred_element_type=jnp.float32)
    h2 = jnp.maximum(h2 + b2_ref[...], 0.0)
    # Layer 3: W3 @ h2 + b3 -> (num_outputs, tile)
    logits = jnp.dot(w3_ref[...], h2, preferred_element_type=jnp.float32)
    o_ref[...] = (logits + b3_ref[...]).astype(o_ref.dtype)


def _round_up(n, m):
    return ((n + m - 1) // m) * m


@jax.jit
def neural_network_forward(x, params):
    w1, b1, w2, b2, w3, b3 = params
    batch, num_inputs = x.shape
    hidden1 = w1.shape[0]
    hidden2 = w2.shape[0]
    num_outputs = w3.shape[0]

    # Lane-dense layout: batch on the lane (last) axis.
    xt = x.T  # (num_inputs, batch)

    if batch <= 128:
        # Single full-extent block (block dims equal the array dims).
        tile = batch
    else:
        # Lane-aligned tile; aim for >= 2 grid steps so v7x's two TensorCores
        # both get work, capped so VMEM stays tiny on every generation.
        tile = min(_TM_MAX, _round_up(pl.cdiv(batch, 2), 128))
    grid = (pl.cdiv(batch, tile),)

    # Weights / biases: constant index_map -> VMEM-resident across grid steps.
    pinned = lambda arr: pl.BlockSpec(arr.shape, lambda i: (0,) * arr.ndim)

    flops = 2 * batch * (num_inputs * hidden1 + hidden1 * hidden2
                         + hidden2 * num_outputs)
    bytes_accessed = 4 * (batch * (num_inputs + num_outputs)
                          + num_inputs * hidden1 + hidden1
                          + hidden1 * hidden2 + hidden2
                          + hidden2 * num_outputs + num_outputs)

    out_t = pl.pallas_call(
        _mlp_kernel,
        out_shape=jax.ShapeDtypeStruct((num_outputs, batch), jnp.float32),
        grid=grid,
        in_specs=[
            pl.BlockSpec((num_inputs, tile), lambda i: (0, i)),
            pinned(w1), pinned(b1),
            pinned(w2), pinned(b2),
            pinned(w3), pinned(b3),
        ],
        out_specs=pl.BlockSpec((num_outputs, tile), lambda i: (0, i)),
        compiler_params=pltpu.CompilerParams(
            dimension_semantics=("parallel",),
        ),
        cost_estimate=pl.CostEstimate(
            flops=flops, transcendentals=0, bytes_accessed=bytes_accessed),
    )(xt, w1, b1, w2, b2, w3, b3)

    return out_t.T  # (batch, num_outputs)


def init_params(key, num_inputs, num_outputs):
    """PyTorch-Linear-style init (uniform +/- 1/sqrt(fan_in)).

    Weights are stored as (out_features, in_features) (PyTorch layout) and
    biases as (out_features, 1) so the kernel computes W @ xT + b lane-densely.
    """
    dims = [(num_inputs, 30), (30, 20), (20, num_outputs)]
    params = []
    for fan_in, fan_out in dims:
        key, kw, kb = jax.random.split(key, 3)
        bound = 1.0 / jnp.sqrt(jnp.float32(fan_in))
        w = jax.random.uniform(kw, (fan_out, fan_in), jnp.float32, -bound, bound)
        b = jax.random.uniform(kb, (fan_out, 1), jnp.float32, -bound, bound)
        params += [w, b]
    return tuple(params)


def _reference_forward(x, params):
    w1, b1, w2, b2, w3, b3 = params
    h = jnp.maximum(x @ w1.T + b1.T, 0.0)
    h = jnp.maximum(h @ w2.T + b2.T, 0.0)
    return h @ w3.T + b3.T


if __name__ == "__main__":
    num_inputs, num_outputs = 4, 3
    batch = 8

    key = jax.random.PRNGKey(0)
    key, kx = jax.random.split(key)
    x = jax.random.normal(kx, (batch, num_inputs), jnp.float32)
    params = init_params(key, num_inputs, num_outputs)

    out = neural_network_forward(x, params)
    out = jax.block_until_ready(out)

    ref = _reference_forward(x, params)
    assert out.shape == (batch, num_outputs)
    assert jnp.allclose(out, ref, atol=1e-5, rtol=1e-5)

    # Non-divisible larger batch exercises the multi-step grid + ragged tail.
    key, kx2 = jax.random.split(key)
    x_big = jax.random.normal(kx2, (1000, num_inputs), jnp.float32)
    out_big = jax.block_until_ready(neural_network_forward(x_big, params))
    ref_big = _reference_forward(x_big, params)
    assert out_big.shape == (1000, num_outputs)
    assert jnp.allclose(out_big, ref_big, atol=1e-5, rtol=1e-5)

    print("KERNEL_OK")
</pallas_src>

<mosaic_0001>
module attributes {stable_mosaic.version = 11 : i64} {
  func.func @_mlp_kernel(%arg0: i32, %arg1: memref<4x8xf32, #tpu.memory_space<vmem>>, %arg2: memref<30x4xf32, #tpu.memory_space<vmem>>, %arg3: memref<30x1xf32, #tpu.memory_space<vmem>>, %arg4: memref<20x30xf32, #tpu.memory_space<vmem>>, %arg5: memref<20x1xf32, #tpu.memory_space<vmem>>, %arg6: memref<3x20xf32, #tpu.memory_space<vmem>>, %arg7: memref<3x1xf32, #tpu.memory_space<vmem>>, %arg8: memref<3x8xf32, #tpu.memory_space<vmem>>) attributes {dimension_semantics = [#tpu.dimension_semantics<parallel>], iteration_bounds = array<i64: 1>, scalar_prefetch = 0 : i64, scratch_operands = 0 : i64, tpu.core_type = #tpu.core_type<tc>, window_params = [{transform_indices = @transform_0, window_bounds = array<i64: 4, 8>}, {pipeline_mode = #tpu.pipeline_mode<synchronous>, transform_indices = @transform_1, window_bounds = array<i64: 30, 4>}, {pipeline_mode = #tpu.pipeline_mode<synchronous>, transform_indices = @transform_2, window_bounds = array<i64: 30, 1>}, {pipeline_mode = #tpu.pipeline_mode<synchronous>, transform_indices = @transform_3, window_bounds = array<i64: 20, 30>}, {pipeline_mode = #tpu.pipeline_mode<synchronous>, transform_indices = @transform_4, window_bounds = array<i64: 20, 1>}, {pipeline_mode = #tpu.pipeline_mode<synchronous>, transform_indices = @transform_5, window_bounds = array<i64: 3, 20>}, {pipeline_mode = #tpu.pipeline_mode<synchronous>, transform_indices = @transform_6, window_bounds = array<i64: 3, 1>}, {transform_indices = @transform_7, window_bounds = array<i64: 3, 8>}]} {
    %c0 = arith.constant 0 : index
    %c0_0 = arith.constant 0 : index
    %0 = vector.load %arg2[%c0, %c0_0] : memref<30x4xf32, #tpu.memory_space<vmem>>, vector<30x4xf32>
    %c0_1 = arith.constant 0 : index
    %c0_2 = arith.constant 0 : index
    %1 = vector.load %arg1[%c0_1, %c0_2] : memref<4x8xf32, #tpu.memory_space<vmem>>, vector<4x8xf32>
    %cst = arith.constant dense<0.000000e+00> : vector<30x8xf32>
    %2 = tpu.matmul %0, %1, %cst {dimension_numbers = #tpu.dot_dimension_numbers<[1], [0], [0], [1], [0, 0, 1, 1], [], []>} : vector<30x4xf32>, vector<4x8xf32>, vector<30x8xf32> -> vector<30x8xf32>
    %c0_3 = arith.constant 0 : index
    %c0_4 = arith.constant 0 : index
    %3 = vector.load %arg3[%c0_3, %c0_4] : memref<30x1xf32, #tpu.memory_space<vmem>>, vector<30x1xf32>
    %4 = vector.broadcast %3 : vector<30x1xf32> to vector<30x8xf32>
    %5 = arith.addf %2, %4 : vector<30x8xf32>
    %cst_5 = arith.constant 0.000000e+00 : f32
    %6 = vector.broadcast %cst_5 : f32 to vector<30x8xf32>
    %7 = arith.maximumf %5, %6 : vector<30x8xf32>
    %c0_6 = arith.constant 0 : index
    %c0_7 = arith.constant 0 : index
    %8 = vector.load %arg4[%c0_6, %c0_7] : memref<20x30xf32, #tpu.memory_space<vmem>>, vector<20x30xf32>
    %cst_8 = arith.constant dense<0.000000e+00> : vector<20x8xf32>
    %9 = tpu.matmul %8, %7, %cst_8 {dimension_numbers = #tpu.dot_dimension_numbers<[1], [0], [0], [1], [0, 0, 1, 1], [], []>} : vector<20x30xf32>, vector<30x8xf32>, vector<20x8xf32> -> vector<20x8xf32>
    %c0_9 = arith.constant 0 : index
    %c0_10 = arith.constant 0 : index
    %10 = vector.load %arg5[%c0_9, %c0_10] : memref<20x1xf32, #tpu.memory_space<vmem>>, vector<20x1xf32>
    %11 = vector.broadcast %10 : vector<20x1xf32> to vector<20x8xf32>
    %12 = arith.addf %9, %11 : vector<20x8xf32>
    %cst_11 = arith.constant 0.000000e+00 : f32
    %13 = vector.broadcast %cst_11 : f32 to vector<20x8xf32>
    %14 = arith.maximumf %12, %13 : vector<20x8xf32>
    %c0_12 = arith.constant 0 : index
    %c0_13 = arith.constant 0 : index
    %15 = vector.load %arg6[%c0_12, %c0_13] : memref<3x20xf32, #tpu.memory_space<vmem>>, vector<3x20xf32>
    %cst_14 = arith.constant dense<0.000000e+00> : vector<3x8xf32>
    %16 = tpu.matmul %15, %14, %cst_14 {dimension_numbers = #tpu.dot_dimension_numbers<[1], [0], [0], [1], [0, 0, 1, 1], [], []>} : vector<3x20xf32>, vector<20x8xf32>, vector<3x8xf32> -> vector<3x8xf32>
    %c0_15 = arith.constant 0 : index
    %c0_16 = arith.constant 0 : index
    %17 = vector.load %arg7[%c0_15, %c0_16] : memref<3x1xf32, #tpu.memory_space<vmem>>, vector<3x1xf32>
    %18 = vector.broadcast %17 : vector<3x1xf32> to vector<3x8xf32>
    %19 = arith.addf %16, %18 : vector<3x8xf32>
    %c0_17 = arith.constant 0 : index
    %c0_18 = arith.constant 0 : index
    %20 = vector.load %arg8[%c0_17, %c0_18] : memref<3x8xf32, #tpu.memory_space<vmem>>, vector<3x8xf32>
    tpu.vector_store %arg8[%c0_17, %c0_18], %19 {strides = array<i32>} : memref<3x8xf32, #tpu.memory_space<vmem>>, vector<3x8xf32>,
    return
  }
  func.func @transform_0(%arg0: i32) -> (i32, i32) {
    %c0_i32 = arith.constant 0 : i32
    %c0_i32_0 = arith.constant 0 : i32
    return %c0_i32, %arg0 : i32, i32
  }
  func.func @transform_1(%arg0: i32) -> (i32, i32) {
    %c0_i32 = arith.constant 0 : i32
    %c0_i32_0 = arith.constant 0 : i32
    %c0_i32_1 = arith.constant 0 : i32
    return %c0_i32, %c0_i32_0 : i32, i32
  }
  func.func @transform_2(%arg0: i32) -> (i32, i32) {
    %c0_i32 = arith.constant 0 : i32
    %c0_i32_0 = arith.constant 0 : i32
    %c0_i32_1 = arith.constant 0 : i32
    return %c0_i32, %c0_i32_0 : i32, i32
  }
  func.func @transform_3(%arg0: i32) -> (i32, i32) {
    %c0_i32 = arith.constant 0 : i32
    %c0_i32_0 = arith.constant 0 : i32
    %c0_i32_1 = arith.constant 0 : i32
    return %c0_i32, %c0_i32_0 : i32, i32
  }
  func.func @transform_4(%arg0: i32) -> (i32, i32) {
    %c0_i32 = arith.constant 0 : i32
    %c0_i32_0 = arith.constant 0 : i32
    %c0_i32_1 = arith.constant 0 : i32
    return %c0_i32, %c0_i32_0 : i32, i32
  }
  func.func @transform_5(%arg0: i32) -> (i32, i32) {
    %c0_i32 = arith.constant 0 : i32
    %c0_i32_0 = arith.constant 0 : i32
    %c0_i32_1 = arith.constant 0 : i32
    return %c0_i32, %c0_i32_0 : i32, i32
  }
  func.func @transform_6(%arg0: i32) -> (i32, i32) {
    %c0_i32 = arith.constant 0 : i32
    %c0_i32_0 = arith.constant 0 : i32
    %c0_i32_1 = arith.constant 0 : i32
    return %c0_i32, %c0_i32_0 : i32, i32
  }
  func.func @transform_7(%arg0: i32) -> (i32, i32) {
    %c0_i32 = arith.constant 0 : i32
    %c0_i32_0 = arith.constant 0 : i32
    return %c0_i32, %arg0 : i32, i32
  }
}

</mosaic_0001>

<llo_original>
// kernel: neural_network_forward.1
$region0: #{neural_network_forward.1}
  #allocation0 [shape = 'u32[]', space=smem, size = 0x4, offset = 0x4, fixed_abs, tag = 'smem constant byte address 0x4 - core index']
  #allocation1 [shape = 'u32[144,128]{1,0:T(1,128)}', space=vmem, size = 0x12000, scoped, tag = 'internal scratch']
  %s0 = inlined_call_operand.vmem [shape: f32[4,8], index: 0, kind: input, shape index: {}]
  %s1 = inlined_call_operand.vmem [shape: f32[30,4], index: 1, kind: input, shape index: {}]
  %s2 = inlined_call_operand.vmem [shape: f32[30,1], index: 2, kind: input, shape index: {}]
  %s3 = inlined_call_operand.vmem [shape: f32[20,30], index: 3, kind: input, shape index: {}]
  %s4 = inlined_call_operand.vmem [shape: f32[20,1], index: 4, kind: input, shape index: {}]
  %s5 = inlined_call_operand.vmem [shape: f32[3,20], index: 5, kind: input, shape index: {}]
  %s6 = inlined_call_operand.vmem [shape: f32[3,1], index: 6, kind: input, shape index: {}]
  %s7 = inlined_call_operand.hbm [shape: f32[3,8], index: 7, kind: output, shape index: {}]
  %s8 = sld [smem:[#allocation0]]
  $region38: #{neural_network_forward.1} parent=0
    _
  %s10 = ssub.s32 1, %s8
  %s11 = scalar_select 0, %s10, %s8
  $region1: #{neural_network_forward.1} parent=0
    #allocation2 [shape = 'u8[2048]{0}', space=vmem, size = 0x800, scoped, tag = 'output window, operand 0, single buffered']
    #allocation3 [shape = 's32[1]{0}', space=sflag, size = 0x4, scoped, tag = 'scoped memory for neural_network_forward.1']
    %12 = vsyncpa [#allocation3], 0
    // Predicated region
    $region2: #{neural_network_forward.1} parent=1 // pred_check
      _
    $region3: #{neural_network_forward.1} parent=1 // pred_check_branch
      %14 = sbr.rel (0) target = $region5
    $region4: #{neural_network_forward.1} parent=1 // pred_region
      _
    $region5: #{neural_network_forward.1} parent=1 // pred_fallthru
      _
    // Predicated region
    $region6: #{neural_network_forward.1} parent=1 // pred_check
      _
    $region7: #{neural_network_forward.1} parent=1 // pred_check_branch
      %16 = sbr.rel (0) target = $region9
    $region8: #{neural_network_forward.1} parent=1 // pred_region
      _
    $region9: #{neural_network_forward.1} parent=1 // pred_fallthru
      _
    // Predicated region
    $region10: #{neural_network_forward.1} parent=1 // pred_check
      _
    $region11: #{neural_network_forward.1} parent=1 // pred_check_branch
      %18 = sbr.rel (0) target = $region13
    $region12: #{neural_network_forward.1} parent=1 // pred_region
      _
    $region13: #{neural_network_forward.1} parent=1 // pred_fallthru
      _
    // Predicated region
    $region14: #{neural_network_forward.1} parent=1 // pred_check
      _
    $region15: #{neural_network_forward.1} parent=1 // pred_check_branch
      %20 = sbr.rel (0) target = $region17
    $region16: #{neural_network_forward.1} parent=1 // pred_region
      _
    $region17: #{neural_network_forward.1} parent=1 // pred_fallthru
      _
    // Predicated region
    $region18: #{neural_network_forward.1} parent=1 // pred_check
      _
    $region19: #{neural_network_forward.1} parent=1 // pred_check_branch
      %22 = sbr.rel (0) target = $region21
    $region20: #{neural_network_forward.1} parent=1 // pred_region
      _
    $region21: #{neural_network_forward.1} parent=1 // pred_fallthru
      _
    // Predicated region
    $region22: #{neural_network_forward.1} parent=1 // pred_check
      _
    $region23: #{neural_network_forward.1} parent=1 // pred_check_branch
      %24 = sbr.rel (0) target = $region25
    $region24: #{neural_network_forward.1} parent=1 // pred_region
      _
    $region25: #{neural_network_forward.1} parent=1 // pred_fallthru
      _
    // Predicated region
    $region26: #{neural_network_forward.1} parent=1 // pred_check
      _
    $region27: #{neural_network_forward.1} parent=1 // pred_check_branch
      %26 = sbr.rel (0) target = $region29
    $region28: #{neural_network_forward.1} parent=1 // pred_region
      _
    $region29: #{neural_network_forward.1} parent=1 // pred_fallthru
      _
    %v27 = vld [vmem:[%s1] sm:$0xff]
    %v28 = vld [vmem:[%s1 + $0x8] sm:$0xff]
    %v29 = vld [vmem:[%s1 + $0x10] sm:$0xff]
    %v30 = vld [vmem:[%s1 + $0x18] sm:$0x3f]
    %v31 = vld [vmem:[%s0] sm:$0xf]
    %v32 = vld [vmem:[%s2] sm:$0xff]
    %v33 = vld [vmem:[%s2 + $0x8] sm:$0xff]
    %v34 = vld [vmem:[%s2 + $0x10] sm:$0xff]
    %v35 = vld [vmem:[%s2 + $0x18] sm:$0x3f]
    %37 = vset.pattern.permute.xlu0 0
    %38 = vperm.xlu0 %37, %v32
    %v39 = vpop.permute.xlu0 %38
    %42 = vset.pattern.permute.xlu0 0
    %43 = vperm.xlu0 %42, %v33
    %v44 = vpop.permute.xlu0 %43
    %47 = vset.pattern.permute.xlu0 0
    %48 = vperm.xlu0 %47, %v34
    %v49 = vpop.permute.xlu0 %48
    %52 = vset.pattern.permute.xlu0 0
    %53 = vperm.xlu0 %52, %v35
    %v54 = vpop.permute.xlu0 %53
    %vm56 = vcmask 31744
    %v58 = vsel %vm56, %v27, 0
    %v61 = vsel %vm56, %v28, 0
    %v64 = vsel %vm56, %v29, 0
    %v67 = vsel %vm56, %v30, 0
    %vm69 = vcmask 1043456
    %v71 = vsel %vm69, %v31, 0
    %73 = vmatprep.subr.mxu0 0.0
    %74 = vmatpush1.msra.mxu0 0.0
    %75 = vmatprep.subr.mxu0 0.0
    %76 = vmatpush1.msra.mxu0 0.0
    %77 = vmatprep.subr.mxu0 0.0
    %78 = vmatpush1.msra.mxu0 0.0
    %79 = vmatprep.subr.mxu0 0.0
    %80 = vmatpush1.msra.mxu0 0.0
    %81 = vmatprep.subr.mxu0 0.0
    %82 = vmatpush1.msra.mxu0 0.0
    %83 = vmatprep.subr.mxu0 0.0
    %84 = vmatpush1.msra.mxu0 0.0
    %85 = vmatprep.subr.mxu0 0.0
    %86 = vmatpush1.msra.mxu0 0.0
    %87 = vmatprep.subr.mxu0 0.0
    %88 = vmatpush1.msra.mxu0 0.0
    %89 = vmatprep.subr.mxu0 0.0
    %90 = vmatpush1.msra.mxu0 0.0
    %91 = vmatprep.subr.mxu0 0.0
    %92 = vmatpush1.msra.mxu0 0.0
    %93 = vmatprep.subr.mxu0 0.0
    %94 = vmatpush1.msra.mxu0 0.0
    %95 = vmatprep.subr.mxu0 0.0
    %96 = vmatpush1.msra.mxu0 0.0
    %97 = vmatprep.subr.mxu0 0.0
    %98 = vmatpush1.msra.mxu0 0.0
    %99 = vmatprep.subr.mxu0 0.0
    %100 = vmatpush1.msra.mxu0 0.0
    %101 = vmatprep.subr.mxu0 0.0
    %102 = vmatpush1.msra.mxu0 0.0
    %103 = vmatprep.subr.mxu0 0.0
    %104 = vmatpush1.msra.mxu0 %v71
    %105 = vmatprep.subr.mxu0 0.0
    %106 = vmatpush2.msra.mxu0 0.0
    %107 = vmatprep.subr.mxu0 0.0
    %108 = vmatpush2.msra.mxu0 0.0
    %109 = vmatprep.subr.mxu0 0.0
    %110 = vmatpush2.msra.mxu0 0.0
    %111 = vmatprep.subr.mxu0 0.0
    %112 = vmatpush2.msra.mxu0 0.0
    %113 = vmatprep.subr.mxu0 0.0
    %114 = vmatpush2.msra.mxu0 0.0
    %115 = vmatprep.subr.mxu0 0.0
    %116 = vmatpush2.msra.mxu0 0.0
    %117 = vmatprep.subr.mxu0 0.0
    %118 = vmatpush2.msra.mxu0 0.0
    %119 = vmatprep.subr.mxu0 0.0
    %120 = vmatpush2.msra.mxu0 0.0
    %121 = vmatprep.subr.mxu0 0.0
    %122 = vmatpush2.msra.mxu0 0.0
    %123 = vmatprep.subr.mxu0 0.0
    %124 = vmatpush2.msra.mxu0 0.0
    %125 = vmatprep.subr.mxu0 0.0
    %126 = vmatpush2.msra.mxu0 0.0
    %127 = vmatprep.subr.mxu0 0.0
    %128 = vmatpush2.msra.mxu0 0.0
    %129 = vmatprep.subr.mxu0 0.0
    %130 = vmatpush2.msra.mxu0 0.0
    %131 = vmatprep.subr.mxu0 0.0
    %132 = vmatpush2.msra.mxu0 0.0
    %133 = vmatprep.subr.mxu0 0.0
    %134 = vmatpush2.msra.mxu0 0.0
    %135 = vmatprep.subr.mxu0 0.0
    %136 = vmatpush2.msra.mxu0 0.0
    %137 = vmatprep.mubr.f32.mxu0 0.0
    %138 = vmatmul.mubr.f32.gmra.mxu0 %v58
    %v139 = vpop.f32.mrf.mxu0
    %v140 = vadd.f32 %v39, %v139
    %v141 = vpop.f32.mrf.mxu0
    %142 = vmatprep.mubr.f32.mxu0 0.0
    %143 = vmatmul.mubr.f32.gmra.mxu0 %v61
    %v144 = vpop.f32.mrf.mxu0
    %v145 = vadd.f32 %v44, %v144
    %v146 = vpop.f32.mrf.mxu0
    %147 = vmatprep.mubr.f32.mxu0 0.0
    %148 = vmatmul.mubr.f32.gmra.mxu0 %v64
    %v149 = vpop.f32.mrf.mxu0
    %v150 = vadd.f32 %v49, %v149
    %v151 = vpop.f32.mrf.mxu0
    %152 = vmatprep.mubr.f32.mxu0 0.0
    %153 = vmatmul.mubr.f32.gmra.mxu0 %v67
    %v154 = vpop.f32.mrf.mxu0
    %v155 = vadd.f32 %v54, %v154
    %v156 = vpop.f32.mrf.mxu0
    %157 = vdwg.mxu0
    %v158 = vmax.f32 %v140, 0.0
    %v159 = vmax.f32 %v145, 0.0
    %v160 = vmax.f32 %v150, 0.0
    %v161 = vmax.f32 %v155, 0.0
    %v162 = vld [vmem:[%s3] sm:$0xff]
    %v163 = vld [vmem:[%s3 + $0x8] sm:$0xff]
    %v164 = vld [vmem:[%s3 + $0x10] sm:$0xf]
    %v165 = vld [vmem:[%s4] sm:$0xff]
    %v166 = vld [vmem:[%s4 + $0x8] sm:$0xff]
    %v167 = vld [vmem:[%s4 + $0x10] sm:$0xf]
    %169 = vset.pattern.permute.xlu0 0
    %170 = vperm.xlu0 %169, %v165
    %v171 = vpop.permute.xlu0 %170
    %174 = vset.pattern.permute.xlu0 0
    %175 = vperm.xlu0 %174, %v166
    %v176 = vpop.permute.xlu0 %175
    %179 = vset.pattern.permute.xlu0 0
    %180 = vperm.xlu0 %179, %v167
    %v181 = vpop.permute.xlu0 %180
    %vm183 = vcmask 244736
    %v185 = vsel %vm183, %v162, 0
    %v188 = vsel %vm183, %v163, 0
    %v191 = vsel %vm183, %v164, 0
    %vm193 = vcmask 1045504
    %v195 = vsel %vm193, %v161, 0
    %197 = vmatprep.subr.mxu0 0.0
    %198 = vmatpush1.msra.mxu0 0.0
    %199 = vmatprep.subr.mxu0 0.0
    %200 = vmatpush1.msra.mxu0 0.0
    %201 = vmatprep.subr.mxu0 0.0
    %202 = vmatpush1.msra.mxu0 0.0
    %203 = vmatprep.subr.mxu0 0.0
    %204 = vmatpush1.msra.mxu0 0.0
    %205 = vmatprep.subr.mxu0 0.0
    %206 = vmatpush1.msra.mxu0 0.0
    %207 = vmatprep.subr.mxu0 0.0
    %208 = vmatpush1.msra.mxu0 0.0
    %209 = vmatprep.subr.mxu0 0.0
    %210 = vmatpush1.msra.mxu0 0.0
    %211 = vmatprep.subr.mxu0 0.0
    %212 = vmatpush1.msra.mxu0 0.0
    %213 = vmatprep.subr.mxu0 0.0
    %214 = vmatpush1.msra.mxu0 0.0
    %215 = vmatprep.subr.mxu0 0.0
    %216 = vmatpush1.msra.mxu0 0.0
    %217 = vmatprep.subr.mxu0 0.0
    %218 = vmatpush1.msra.mxu0 0.0
    %219 = vmatprep.subr.mxu0 0.0
    %220 = vmatpush1.msra.mxu0 0.0
    %221 = vmatprep.subr.mxu0 0.0
    %222 = vmatpush1.msra.mxu0 %v195
    %223 = vmatprep.subr.mxu0 0.0
    %224 = vmatpush1.msra.mxu0 %v160
    %225 = vmatprep.subr.mxu0 0.0
    %226 = vmatpush1.msra.mxu0 %v159
    %227 = vmatprep.subr.mxu0 0.0
    %228 = vmatpush1.msra.mxu0 %v158
    %229 = vmatprep.subr.mxu0 0.0
    %230 = vmatpush2.msra.mxu0 0.0
    %231 = vmatprep.subr.mxu0 0.0
    %232 = vmatpush2.msra.mxu0 0.0
    %233 = vmatprep.subr.mxu0 0.0
    %234 = vmatpush2.msra.mxu0 0.0
    %235 = vmatprep.subr.mxu0 0.0
    %236 = vmatpush2.msra.mxu0 0.0
    %237 = vmatprep.subr.mxu0 0.0
    %238 = vmatpush2.msra.mxu0 0.0
    %239 = vmatprep.subr.mxu0 0.0
    %240 = vmatpush2.msra.mxu0 0.0
    %241 = vmatprep.subr.mxu0 0.0
    %242 = vmatpush2.msra.mxu0 0.0
    %243 = vmatprep.subr.mxu0 0.0
    %244 = vmatpush2.msra.mxu0 0.0
    %245 = vmatprep.subr.mxu0 0.0
    %246 = vmatpush2.msra.mxu0 0.0
    %247 = vmatprep.subr.mxu0 0.0
    %248 = vmatpush2.msra.mxu0 0.0
    %249 = vmatprep.subr.mxu0 0.0
    %250 = vmatpush2.msra.mxu0 0.0
    %251 = vmatprep.subr.mxu0 0.0
    %252 = vmatpush2.msra.mxu0 0.0
    %253 = vmatprep.subr.mxu0 0.0
    %254 = vmatpush2.msra.mxu0 0.0
    %255 = vmatprep.subr.mxu0 0.0
    %256 = vmatpush2.msra.mxu0 0.0
    %257 = vmatprep.subr.mxu0 0.0
    %258 = vmatpush2.msra.mxu0 0.0
    %259 = vmatprep.subr.mxu0 0.0
    %260 = vmatpush2.msra.mxu0 0.0
    %261 = vmatprep.mubr.f32.mxu0 0.0
    %262 = vmatmul.mubr.f32.gmra.mxu0 %v185
    %v263 = vpop.f32.mrf.mxu0
    %v264 = vadd.f32 %v171, %v263
    %v265 = vpop.f32.mrf.mxu0
    %266 = vmatprep.mubr.f32.mxu0 0.0
    %267 = vmatmul.mubr.f32.gmra.mxu0 %v188
    %v268 = vpop.f32.mrf.mxu0
    %v269 = vadd.f32 %v176, %v268
    %v270 = vpop.f32.mrf.mxu0
    %271 = vmatprep.mubr.f32.mxu0 0.0
    %272 = vmatmul.mubr.f32.gmra.mxu0 %v191
    %v273 = vpop.f32.mrf.mxu0
    %v274 = vadd.f32 %v181, %v273
    %v275 = vpop.f32.mrf.mxu0
    %276 = vdwg.mxu0
    %v277 = vmax.f32 %v264, 0.0
    %v278 = vmax.f32 %v269, 0.0
    %v279 = vmax.f32 %v274, 0.0
    %v280 = vld [vmem:[%s5] sm:$0x7]
    %v281 = vld [vmem:[%s6] sm:$0x7]
    %283 = vset.pattern.permute.xlu0 0
    %284 = vperm.xlu0 %283, %v281
    %v285 = vpop.permute.xlu0 %284
    %vm287 = vcmask 162816
    %v289 = vsel %vm287, %v280, 0
    %v292 = vsel %vm69, %v279, 0
    %294 = vmatprep.subr.mxu0 0.0
    %295 = vmatpush1.msra.mxu0 0.0
    %296 = vmatprep.subr.mxu0 0.0
    %297 = vmatpush1.msra.mxu0 0.0
    %298 = vmatprep.subr.mxu0 0.0
    %299 = vmatpush1.msra.mxu0 0.0
    %300 = vmatprep.subr.mxu0 0.0
    %301 = vmatpush1.msra.mxu0 0.0
    %302 = vmatprep.subr.mxu0 0.0
    %303 = vmatpush1.msra.mxu0 0.0
    %304 = vmatprep.subr.mxu0 0.0
    %305 = vmatpush1.msra.mxu0 0.0
    %306 = vmatprep.subr.mxu0 0.0
    %307 = vmatpush1.msra.mxu0 0.0
    %308 = vmatprep.subr.mxu0 0.0
    %309 = vmatpush1.msra.mxu0 0.0
    %310 = vmatprep.subr.mxu0 0.0
    %311 = vmatpush1.msra.mxu0 0.0
    %312 = vmatprep.subr.mxu0 0.0
    %313 = vmatpush1.msra.mxu0 0.0
    %314 = vmatprep.subr.mxu0 0.0
    %315 = vmatpush1.msra.mxu0 0.0
    %316 = vmatprep.subr.mxu0 0.0
    %317 = vmatpush1.msra.mxu0 0.0
    %318 = vmatprep.subr.mxu0 0.0
    %319 = vmatpush1.msra.mxu0 0.0
    %320 = vmatprep.subr.mxu0 0.0
    %321 = vmatpush1.msra.mxu0 %v292
    %322 = vmatprep.subr.mxu0 0.0
    %323 = vmatpush1.msra.mxu0 %v278
    %324 = vmatprep.subr.mxu0 0.0
    %325 = vmatpush1.msra.mxu0 %v277
    %326 = vmatprep.subr.mxu0 0.0
    %327 = vmatpush2.msra.mxu0 0.0
    %328 = vmatprep.subr.mxu0 0.0
    %329 = vmatpush2.msra.mxu0 0.0
    %330 = vmatprep.subr.mxu0 0.0
    %331 = vmatpush2.msra.mxu0 0.0
    %332 = vmatprep.subr.mxu0 0.0
    %333 = vmatpush2.msra.mxu0 0.0
    %334 = vmatprep.subr.mxu0 0.0
    %335 = vmatpush2.msra.mxu0 0.0
    %336 = vmatprep.subr.mxu0 0.0
    %337 = vmatpush2.msra.mxu0 0.0
    %338 = vmatprep.subr.mxu0 0.0
    %339 = vmatpush2.msra.mxu0 0.0
    %340 = vmatprep.subr.mxu0 0.0
    %341 = vmatpush2.msra.mxu0 0.0
    %342 = vmatprep.subr.mxu0 0.0
    %343 = vmatpush2.msra.mxu0 0.0
    %344 = vmatprep.subr.mxu0 0.0
    %345 = vmatpush2.msra.mxu0 0.0
    %346 = vmatprep.subr.mxu0 0.0
    %347 = vmatpush2.msra.mxu0 0.0
    %348 = vmatprep.subr.mxu0 0.0
    %349 = vmatpush2.msra.mxu0 0.0
    %350 = vmatprep.subr.mxu0 0.0
    %351 = vmatpush2.msra.mxu0 0.0
    %352 = vmatprep.subr.mxu0 0.0
    %353 = vmatpush2.msra.mxu0 0.0
    %354 = vmatprep.subr.mxu0 0.0
    %355 = vmatpush2.msra.mxu0 0.0
    %356 = vmatprep.subr.mxu0 0.0
    %357 = vmatpush2.msra.mxu0 0.0
    %358 = vmatprep.mubr.f32.mxu0 0.0
    %359 = vmatmul.mubr.f32.gmra.mxu0 %v289
    %v360 = vpop.f32.mrf.mxu0
    %v361 = vadd.f32 %v285, %v360
    %v362 = vpop.f32.mrf.mxu0
    %363 = vdwg.mxu0
    %vm364 = vcmask 59392
    %365 = vst.msk [vmem:[#allocation2] sm:$0x7] %vm364, %v361
    // Predicated region
    $region30: #{neural_network_forward.1} parent=1 // pred_check
      _
    $region31: #{neural_network_forward.1} parent=1 // pred_check_branch
      %367 = sbr.rel (0) target = $region33
    $region32: #{neural_network_forward.1} parent=1 // pred_region
      %s369 = ssub.s32 64, 64
      %370 = vsyncadd [#allocation3], %s369
      %s372 = sshll.u32 [#allocation2], 4
      %s373 = int_to_ptr.vmem [resolvable:$true] %s372
      %375 = dma.vmem_to_hbm [thread:$0]  %s373, 64, %s7, [#allocation3]
    $region33: #{neural_network_forward.1} parent=1 // pred_fallthru
      _
    // Predicated region
    $region34: #{neural_network_forward.1} parent=1 // pred_check
      _
    $region35: #{neural_network_forward.1} parent=1 // pred_check_branch
      %377 = sbr.rel (0) target = $region37
    $region36: #{neural_network_forward.1} parent=1 // pred_region
      %378 = dma.done [#allocation3], 64
    $region37: #{neural_network_forward.1} parent=1 // pred_fallthru
      _
    %379 = vsyncpa [#allocation3], 1

</llo_original>
